<compile_context>
chip_gen: v7x
topology: tpu7x:2x2x1
jax: 0.10.0
libtpu: 0.0.40
codegen_flags: <defaults>
</compile_context>

<pallas_src>
import jax
import jax.numpy as jnp
import numpy as np
from jax import lax
from jax.experimental import pallas as pl
from jax.experimental.pallas import tpu as pltpu

N_CLASS = 5
KSIZE = 3
PAD = 1
STEM_F = 32  # conv stem output channels


def _round_up(x, m):
    return ((x + m - 1) // m) * m


def _im2col_nhwc(x_nhwc, k=KSIZE, pad=PAD):
    """(N,H,W,C) -> (N*H*W, k*k*C) patches, stride 1, zero padding."""
    n, h, w, c = x_nhwc.shape
    xp = jnp.pad(x_nhwc, ((0, 0), (pad, pad), (pad, pad), (0, 0)))
    cols = []
    for dh in range(k):
        for dw in range(k):
            cols.append(xp[:, dh:dh + h, dw:dw + w, :])
    patches = jnp.concatenate(cols, axis=-1)          # (N,H,W,k*k*C)
    return patches.reshape(n * h * w, k * k * c)


def _make_kernel(tm, hw, s_pad, inv_hw):
    """Build the tiled conv-stem + GAP + head kernel with static shape params."""
    mask_needed = (s_pad != hw)

    def kernel(patches_ref, convw_ref, convb_ref, headw_ref, headb_ref,
               out_ref, acc_ref):
        t = pl.program_id(1)

        @pl.when(t == 0)
        def _():
            acc_ref[...] = jnp.zeros_like(acc_ref)

        # Conv stem as an im2col matmul on this spatial tile (bf16 in, f32 acc).
        feat = jnp.dot(patches_ref[0], convw_ref[...],
                       preferred_element_type=jnp.float32)
        feat = jnp.maximum(feat + convb_ref[...], 0.0)        # (TM, F_pad) f32

        if mask_needed:
            # Zero out rows past H*W so spatial padding never pollutes the pool.
            row = t * tm + lax.broadcasted_iota(jnp.int32, feat.shape, 0)
            feat = jnp.where(row < hw, feat, 0.0)

        # Global average pool: accumulate the per-tile spatial sum (VPU/XLU).
        acc_ref[...] += jnp.sum(feat, axis=0, keepdims=True)

        @pl.when(t == pl.num_programs(1) - 1)
        def _():
            pooled = acc_ref[...] * inv_hw                    # (1, F_pad) f32
            logits = jnp.dot(pooled, headw_ref[...],
                             preferred_element_type=jnp.float32) + headb_ref[...]
            out_ref[...] = logits.reshape(out_ref.shape).astype(out_ref.dtype)

    return kernel


def init_params(key, in_ch):
    k_dim = KSIZE * KSIZE * in_ch
    k1, k2, k3, k4 = jax.random.split(key, 4)
    conv_w = (jax.random.normal(k1, (k_dim, STEM_F), jnp.float32)
              * (1.0 / np.sqrt(k_dim)))
    conv_b = jax.random.normal(k2, (1, STEM_F), jnp.float32) * 0.01
    head_w = (jax.random.normal(k3, (STEM_F, N_CLASS), jnp.float32)
              * (1.0 / np.sqrt(STEM_F)))
    head_b = jax.random.normal(k4, (1, N_CLASS), jnp.float32) * 0.01
    return conv_w, conv_b, head_w, head_b


def cassva_forward(x_nchw, params, *, tm=512):
    """x_nchw: (N, C, H, W) float32  ->  logits (N, 5) float32."""
    conv_w, conv_b, head_w, head_b = params
    n, c, h, w = x_nchw.shape
    hw = h * w
    k_dim = KSIZE * KSIZE * c

    # MXU / vreg friendly padded dims.
    k_pad = _round_up(k_dim, 128)
    f_pad = _round_up(STEM_F, 128)
    out_pad = _round_up(N_CLASS, 128)

    # Spatial tile size: multiple of 16 (bf16 sublane packing), capped at H*W.
    tm = int(min(tm, _round_up(hw, 16)))
    tm = _round_up(tm, 16)
    n_tiles = -(-hw // tm)
    s_pad = n_tiles * tm

    x_nhwc = jnp.transpose(x_nchw, (0, 2, 3, 1))
    patches = _im2col_nhwc(x_nhwc).reshape(n, hw, k_dim)
    patches = jnp.pad(patches, ((0, 0), (0, s_pad - hw), (0, k_pad - k_dim)))
    patches = patches.astype(jnp.bfloat16)

    conv_w_p = jnp.pad(conv_w, ((0, k_pad - k_dim),
                                (0, f_pad - STEM_F))).astype(jnp.bfloat16)
    conv_b_p = jnp.pad(conv_b, ((0, 0), (0, f_pad - STEM_F)))        # f32
    head_w_p = jnp.pad(head_w, ((0, f_pad - STEM_F),
                                (0, out_pad - N_CLASS)))             # f32
    head_b_p = jnp.pad(head_b, ((0, 0), (0, out_pad - N_CLASS)))     # f32

    kernel = _make_kernel(tm, hw, s_pad, 1.0 / float(hw))

    out = pl.pallas_call(
        kernel,
        out_shape=jax.ShapeDtypeStruct((n, 1, out_pad), jnp.float32),
        grid=(n, n_tiles),
        in_specs=[
            pl.BlockSpec((1, tm, k_pad), lambda b, t: (b, t, 0)),    # patches
            pl.BlockSpec((k_pad, f_pad), lambda b, t: (0, 0)),       # conv_w
            pl.BlockSpec((1, f_pad), lambda b, t: (0, 0)),           # conv_b
            pl.BlockSpec((f_pad, out_pad), lambda b, t: (0, 0)),     # head_w
            pl.BlockSpec((1, out_pad), lambda b, t: (0, 0)),         # head_b
        ],
        out_specs=pl.BlockSpec((1, 1, out_pad), lambda b, t: (b, 0, 0)),
        scratch_shapes=[pltpu.VMEM((1, f_pad), jnp.float32)],
        compiler_params=pltpu.CompilerParams(
            dimension_semantics=("parallel", "arbitrary"),
            vmem_limit_bytes=32 * 1024 * 1024),
    )(patches, conv_w_p, conv_b_p, head_w_p, head_b_p)

    return out.reshape(n, out_pad)[:, :N_CLASS]


def _reference_forward(x_nchw, params):
    """Pure-JAX f32 reference with identical math (for correctness check)."""
    conv_w, conv_b, head_w, head_b = params
    n, c, h, w = x_nchw.shape
    x_nhwc = jnp.transpose(x_nchw, (0, 2, 3, 1))
    patches = _im2col_nhwc(x_nhwc)
    feat = jnp.maximum(patches @ conv_w + conv_b, 0.0)
    pooled = feat.reshape(n, h * w, STEM_F).mean(axis=1)
    return pooled @ head_w + head_b


if __name__ == "__main__":
    key = jax.random.PRNGKey(0)
    kx, kp = jax.random.split(key)

    batch, channels, spatial = 2, 4, 16
    x = jax.random.normal(kx, (batch, channels, spatial, spatial), jnp.float32)
    params = init_params(kp, channels)

    # tm=96 forces multiple spatial tiles AND a partially-valid last tile
    # (H*W=256 -> 3 tiles of 96) so the accumulator + row-mask paths are tested.
    logits = jax.block_until_ready(cassva_forward(x, params, tm=96))
    ref = jax.block_until_ready(_reference_forward(x, params))

    assert logits.shape == (batch, N_CLASS)
    # bf16 MXU operands (f32 accumulation) -> loosened tolerance vs f32 reference.
    np.testing.assert_allclose(np.asarray(logits), np.asarray(ref),
                               rtol=2e-2, atol=2e-2)
    print("KERNEL_OK")
</pallas_src>

<mosaic_0001>
module attributes {stable_mosaic.version = 11 : i64} {
  func.func @kernel(%arg0: i32, %arg1: i32, %arg2: memref<1x96x128xbf16, #tpu.memory_space<vmem>>, %arg3: memref<128x128xbf16, #tpu.memory_space<vmem>>, %arg4: memref<1x128xf32, #tpu.memory_space<vmem>>, %arg5: memref<128x128xf32, #tpu.memory_space<vmem>>, %arg6: memref<1x128xf32, #tpu.memory_space<vmem>>, %arg7: memref<1x1x128xf32, #tpu.memory_space<vmem>>, %arg8: memref<1x128xf32, #tpu.memory_space<vmem>>) attributes {dimension_semantics = [#tpu.dimension_semantics<parallel>, #tpu.dimension_semantics<arbitrary>], iteration_bounds = array<i64: 2, 3>, scalar_prefetch = 0 : i64, scratch_operands = 1 : i64, tpu.core_type = #tpu.core_type<tc>, window_params = [{transform_indices = @transform_0, window_bounds = array<i64: 1, 96, 128>}, {pipeline_mode = #tpu.pipeline_mode<synchronous>, transform_indices = @transform_1, window_bounds = array<i64: 128, 128>}, {pipeline_mode = #tpu.pipeline_mode<synchronous>, transform_indices = @transform_2, window_bounds = array<i64: 1, 128>}, {pipeline_mode = #tpu.pipeline_mode<synchronous>, transform_indices = @transform_3, window_bounds = array<i64: 128, 128>}, {pipeline_mode = #tpu.pipeline_mode<synchronous>, transform_indices = @transform_4, window_bounds = array<i64: 1, 128>}, {transform_indices = @transform_5, window_bounds = array<i64: 1, 1, 128>}]} {
    %c0_i32 = arith.constant 0 : i32
    %0 = arith.cmpi eq, %arg1, %c0_i32 : i32
    %1 = arith.extui %0 : i1 to i32
    %c0_i32_0 = arith.constant 0 : i32
    %2 = arith.cmpi ne, %1, %c0_i32_0 : i32
    scf.if %2 {
      %cst_15 = arith.constant 0.000000e+00 : f32
      %28 = vector.broadcast %cst_15 : f32 to vector<1x128xf32>
      %c0_16 = arith.constant 0 : index
      %c0_17 = arith.constant 0 : index
      %29 = vector.load %arg8[%c0_16, %c0_17] : memref<1x128xf32, #tpu.memory_space<vmem>>, vector<1x128xf32>
      tpu.vector_store %arg8[%c0_16, %c0_17], %28 {strides = array<i32>} : memref<1x128xf32, #tpu.memory_space<vmem>>, vector<1x128xf32>,
    } else {
    }
    %c0 = arith.constant 0 : index
    %c0_1 = arith.constant 0 : index
    %c0_2 = arith.constant 0 : index
    %3 = vector.load %arg2[%c0, %c0_1, %c0_2] : memref<1x96x128xbf16, #tpu.memory_space<vmem>>, vector<1x96x128xbf16>
    %4 = vector.shape_cast %3 : vector<1x96x128xbf16> to vector<96x128xbf16>
    %c0_3 = arith.constant 0 : index
    %c0_4 = arith.constant 0 : index
    %5 = vector.load %arg3[%c0_3, %c0_4] : memref<128x128xbf16, #tpu.memory_space<vmem>>, vector<128x128xbf16>
    %cst = arith.constant dense<0.000000e+00> : vector<96x128xf32>
    %6 = tpu.matmul %4, %5, %cst {dimension_numbers = #tpu.dot_dimension_numbers<[1], [0], [0], [1], [0, 0, 1, 1], [], []>} : vector<96x128xbf16>, vector<128x128xbf16>, vector<96x128xf32> -> vector<96x128xf32>
    %c0_5 = arith.constant 0 : index
    %c0_6 = arith.constant 0 : index
    %7 = vector.load %arg4[%c0_5, %c0_6] : memref<1x128xf32, #tpu.memory_space<vmem>>, vector<1x128xf32>
    %8 = vector.broadcast %7 : vector<1x128xf32> to vector<96x128xf32>
    %9 = arith.addf %6, %8 : vector<96x128xf32>
    %cst_7 = arith.constant 0.000000e+00 : f32
    %10 = vector.broadcast %cst_7 : f32 to vector<96x128xf32>
    %11 = arith.maximumf %9, %10 : vector<96x128xf32>
    %c96_i32 = arith.constant 96 : i32
    %12 = arith.muli %arg1, %c96_i32 : i32
    %13 = tpu.iota {dimensions = array<i32: 0>} : vector<96x128xi32>
    %14 = vector.broadcast %12 : i32 to vector<96x128xi32>
    %15 = arith.addi %14, %13 : vector<96x128xi32>
    %c256_i32 = arith.constant 256 : i32
    %16 = vector.broadcast %c256_i32 : i32 to vector<96x128xi32>
    %17 = arith.cmpi slt, %15, %16 : vector<96x128xi32>
    %cst_8 = arith.constant 0.000000e+00 : f32
    %18 = vector.broadcast %cst_8 : f32 to vector<96x128xf32>
    %19 = arith.select %17, %11, %18 : vector<96x128xi1>, vector<96x128xf32>
    %c0_9 = arith.constant 0 : index
    %c0_10 = arith.constant 0 : index
    %20 = vector.load %arg8[%c0_9, %c0_10] : memref<1x128xf32, #tpu.memory_space<vmem>>, vector<1x128xf32>
    %cst_11 = arith.constant dense<0.000000e+00> : vector<128xf32>
    %21 = vector.multi_reduction <add>, %19, %cst_11 [0] : vector<96x128xf32> to vector<128xf32>
    %22 = vector.shape_cast %21 : vector<128xf32> to vector<1x128xf32>
    %23 = arith.addf %20, %22 : vector<1x128xf32>
    %c0_12 = arith.constant 0 : index
    %c0_13 = arith.constant 0 : index
    %24 = vector.load %arg8[%c0_12, %c0_13] : memref<1x128xf32, #tpu.memory_space<vmem>>, vector<1x128xf32>
    tpu.vector_store %arg8[%c0_12, %c0_13], %23 {strides = array<i32>} : memref<1x128xf32, #tpu.memory_space<vmem>>, vector<1x128xf32>,
    %c2_i32 = arith.constant 2 : i32
    %25 = arith.cmpi eq, %arg1, %c2_i32 : i32
    %26 = arith.extui %25 : i1 to i32
    %c0_i32_14 = arith.constant 0 : i32
    %27 = arith.cmpi ne, %26, %c0_i32_14 : i32
    scf.if %27 {
      %c0_15 = arith.constant 0 : index
      %c0_16 = arith.constant 0 : index
      %28 = vector.load %arg8[%c0_15, %c0_16] : memref<1x128xf32, #tpu.memory_space<vmem>>, vector<1x128xf32>
      %cst_17 = arith.constant 3.906250e-03 : f32
      %29 = vector.broadcast %cst_17 : f32 to vector<1x128xf32>
      %30 = arith.mulf %28, %29 : vector<1x128xf32>
      %c0_18 = arith.constant 0 : index
      %c0_19 = arith.constant 0 : index
      %31 = vector.load %arg5[%c0_18, %c0_19] : memref<128x128xf32, #tpu.memory_space<vmem>>, vector<128x128xf32>
      %cst_20 = arith.constant dense<0.000000e+00> : vector<1x128xf32>
      %32 = tpu.matmul %30, %31, %cst_20 {dimension_numbers = #tpu.dot_dimension_numbers<[1], [0], [0], [1], [0, 0, 1, 1], [], []>} : vector<1x128xf32>, vector<128x128xf32>, vector<1x128xf32> -> vector<1x128xf32>
      %c0_21 = arith.constant 0 : index
      %c0_22 = arith.constant 0 : index
      %33 = vector.load %arg6[%c0_21, %c0_22] : memref<1x128xf32, #tpu.memory_space<vmem>>, vector<1x128xf32>
      %34 = arith.addf %32, %33 : vector<1x128xf32>
      %35 = vector.shape_cast %34 : vector<1x128xf32> to vector<1x1x128xf32>
      %c0_23 = arith.constant 0 : index
      %c0_24 = arith.constant 0 : index
      %c0_25 = arith.constant 0 : index
      %36 = vector.load %arg7[%c0_23, %c0_24, %c0_25] : memref<1x1x128xf32, #tpu.memory_space<vmem>>, vector<1x1x128xf32>
      tpu.vector_store %arg7[%c0_23, %c0_24, %c0_25], %35 {strides = array<i32>} : memref<1x1x128xf32, #tpu.memory_space<vmem>>, vector<1x1x128xf32>,
    } else {
    }
    return
  }
  func.func @transform_0(%arg0: i32, %arg1: i32) -> (i32, i32, i32) {
    %c0_i32 = arith.constant 0 : i32
    %c0_i32_0 = arith.constant 0 : i32
    return %arg0, %arg1, %c0_i32 : i32, i32, i32
  }
  func.func @transform_1(%arg0: i32, %arg1: i32) -> (i32, i32) {
    %c0_i32 = arith.constant 0 : i32
    %c0_i32_0 = arith.constant 0 : i32
    %c0_i32_1 = arith.constant 0 : i32
    return %c0_i32, %c0_i32_0 : i32, i32
  }
  func.func @transform_2(%arg0: i32, %arg1: i32) -> (i32, i32) {
    %c0_i32 = arith.constant 0 : i32
    %c0_i32_0 = arith.constant 0 : i32
    %c0_i32_1 = arith.constant 0 : i32
    return %c0_i32, %c0_i32_0 : i32, i32
  }
  func.func @transform_3(%arg0: i32, %arg1: i32) -> (i32, i32) {
    %c0_i32 = arith.constant 0 : i32
    %c0_i32_0 = arith.constant 0 : i32
    %c0_i32_1 = arith.constant 0 : i32
    return %c0_i32, %c0_i32_0 : i32, i32
  }
  func.func @transform_4(%arg0: i32, %arg1: i32) -> (i32, i32) {
    %c0_i32 = arith.constant 0 : i32
    %c0_i32_0 = arith.constant 0 : i32
    %c0_i32_1 = arith.constant 0 : i32
    return %c0_i32, %c0_i32_0 : i32, i32
  }
  func.func @transform_5(%arg0: i32, %arg1: i32) -> (i32, i32, i32) {
    %c0_i32 = arith.constant 0 : i32
    %c0_i32_0 = arith.constant 0 : i32
    %c0_i32_1 = arith.constant 0 : i32
    return %arg0, %c0_i32, %c0_i32_0 : i32, i32, i32
  }
}

</mosaic_0001>

<llo_original>
// kernel: tpu_custom_call.1
$region0: #{tpu_custom_call.1}
  #allocation0 [shape = 'u32[]', space=smem, size = 0x4, offset = 0x4, fixed_abs, tag = 'smem constant byte address 0x4 - core index']
  #allocation1 [shape = 'u32[144,128]{1,0:T(1,128)}', space=vmem, size = 0x12000, scoped, tag = 'internal scratch']
  #allocation2 [shape = 'f32[1,128]{1,0:T(1,128)}', space=vmem, size = 0x200, scoped, tag = 'scratch operand']
  %s0 = inlined_call_operand.hbm [shape: bf16[2,288,128], index: 0, kind: input, shape index: {}]
  %s1 = inlined_call_operand.hbm [shape: bf16[128,128], index: 1, kind: input, shape index: {}]
  %s2 = inlined_call_operand.vmem [shape: f32[1,128], index: 2, kind: input, shape index: {}]
  %s3 = inlined_call_operand.hbm [shape: f32[128,128], index: 3, kind: input, shape index: {}]
  %s4 = inlined_call_operand.vmem [shape: f32[1,128], index: 4, kind: input, shape index: {}]
  %s5 = inlined_call_operand.hbm [shape: f32[2,1,128], index: 5, kind: output, shape index: {}]
  %s6 = sld [smem:[#allocation0]]
  $region73: #{tpu_custom_call.1} parent=0
    _
  %s8 = ssub.s32 1, %s6
  %s9 = scalar_select 0, %s8, %s6
  $region1: #{tpu_custom_call.1} parent=0
    #allocation3 [shape = 'u8[49152]{0}', space=vmem, size = 0xc000, scoped, tag = 'input window, operand 0']
    #allocation4 [shape = 's32[2]{0}', space=sflag, size = 0x8, scoped, tag = 'scoped memory for tpu_custom_call.1']
    #allocation5 [shape = 's32[2]{0}', space=sflag, size = 0x8, scoped, tag = 'scoped memory for tpu_custom_call.1']
    #allocation6 [shape = 'u8[32768]{0}', space=vmem, size = 0x8000, scoped, tag = 'input window, operand 1, single buffered']
    #allocation7 [shape = 's32[1]{0}', space=sflag, size = 0x4, scoped, tag = 'scoped memory for tpu_custom_call.1']
    #allocation8 [shape = 'u8[65536]{0}', space=vmem, size = 0x10000, scoped, tag = 'input window, operand 3, single buffered']
    #allocation9 [shape = 'u8[1024]{0}', space=vmem, size = 0x400, scoped, tag = 'output window, operand 0']
    %10 = vsyncpa [#allocation4], 0
    %s11 = scalar_lea.sflag [#allocation4], 1
    %12 = vsyncpa %s11, 0
    %13 = vsyncpa [#allocation7], 0
    %14 = vsyncpa [#allocation5], 0
    %s15 = scalar_lea.sflag [#allocation5], 1
    %16 = vsyncpa %s15, 0
    loop: start=0, step=1, limit=8
    $region2: #{tpu_custom_call.1} parent=1 // loop_pre_header
      _
    $region3: #{tpu_custom_call.1} parent=1 // loop_header
      %s18 = sphi 0, %s22
      %p19 = scmp.ge.s32.totalorder %s18, 8
      %s25 = sphi 0, %s37
      %s26 = sphi 0, %s33
      %s27 = sphi 0, %s25
      %s28 = sphi 0, %s26
      %s29 = sphi 0, %s27
      %s30 = sphi 0, %s28
      %s42 = sphi 0, %s44
      %s45 = sphi 0, %s42
      %s46 = sphi 0, %s45
      %s62 = sphi 0, %s46
      %s66 = sphi 0, %s66
      %s68 = sphi 0, %s66
      %s69 = sphi 0, %s68
      %s83 = sphi 0, %s69
      %s87 = sphi 0, %s87
      %s89 = sphi 0, %s87
      %s90 = sphi 0, %s89
      %s104 = sphi 0, %s90
      %s108 = sphi 0, %s108
      %s110 = sphi 0, %s108
      %s111 = sphi 0, %s110
      %s125 = sphi 0, %s111
      %s129 = sphi 0, %s129
      %s131 = sphi 0, %s129
      %s132 = sphi 0, %s131
      %s146 = sphi 0, %s132
      %s152 = sphi 0, %s154
      %s155 = sphi 0, %s152
      %s156 = sphi 0, %s155
      %s172 = sphi 0, %s156
    $region4: #{tpu_custom_call.1} parent=1 // loop_header_branch
      %21 = sbr.rel (%p19) target = $region8
    $region5: #{tpu_custom_call.1} parent=1 // loop_body
      %s23 = ssub.s32 %s18, 1
      %s24 = ssub.s32 %s18, 2
      %s31 = sadd.s32 1, %s26
      %p32 = scmp.ge.s32.totalorder %s31, 3
      %s33 = scalar_select %p32, 0, %s31
      %s34 = sadd.s32 1, %s25
      %s35 = scalar_select %p32, %s34, %s25
      %p36 = scmp.ge.s32.totalorder %s35, 2
      %s37 = scalar_select %p36, 0, %s35
      %s38 = ssub.s32 %s25, %s37
      %s39 = ssub.s32 %s26, %s33
      %s40 = sor.u32 %s38, %s39
      %p41 = scmp.eq.s32.totalorder %s40, 0
      %s43 = sadd.s32 %s42, 1
      %s44 = scalar_select %p41, %s42, %s43
      %p47 = pneg %p41
      %p48 = scmp.eq.s32.totalorder %s18, 5
      %p49 = por %p47, %p48
      %p50 = scmp.ne.s32.totalorder %s42, %s45
      %p51 = scmp.eq.s32.totalorder %s18, 0
      %p52 = por %p50, %p51
      %p53 = scmp.ne.s32.totalorder %s42, %s45
      %p54 = scmp.eq.s32.totalorder %s23, 5
      %p55 = por %p53, %p54
      %p56 = scmp.ne.s32.totalorder %s45, %s46
      %p57 = scmp.eq.s32.totalorder %s23, 0
      %p58 = por %p56, %p57
      %p59 = scmp.ne.s32.totalorder %s45, %s46
      %p60 = scmp.eq.s32.totalorder %s24, 5
      %p61 = por %p59, %p60
      %p63 = scmp.ne.s32.totalorder %s46, %s62
      %p64 = scmp.eq.s32.totalorder %s24, 0
      %p65 = por %p63, %p64
      %s67 = sadd.s32 %s66, 1
      %p70 = scmp.eq.s32.totalorder %s18, 5
      %p71 = scmp.ne.s32.totalorder %s66, %s68
      %p72 = scmp.eq.s32.totalorder %s18, 0
      %p73 = por %p71, %p72
      %p74 = scmp.ne.s32.totalorder %s66, %s68
      %p75 = scmp.eq.s32.totalorder %s23, 5
      %p76 = por %p74, %p75
      %p77 = scmp.ne.s32.totalorder %s68, %s69
      %p78 = scmp.eq.s32.totalorder %s23, 0
      %p79 = por %p77, %p78
      %p80 = scmp.ne.s32.totalorder %s68, %s69
      %p81 = scmp.eq.s32.totalorder %s24, 5
      %p82 = por %p80, %p81
      %p84 = scmp.ne.s32.totalorder %s69, %s83
      %p85 = scmp.eq.s32.totalorder %s24, 0
      %p86 = por %p84, %p85
      %s88 = sadd.s32 %s87, 1
      %p91 = scmp.eq.s32.totalorder %s18, 5
      %p92 = scmp.ne.s32.totalorder %s87, %s89
      %p93 = scmp.eq.s32.totalorder %s18, 0
      %p94 = por %p92, %p93
      %p95 = scmp.ne.s32.totalorder %s87, %s89
      %p96 = scmp.eq.s32.totalorder %s23, 5
      %p97 = por %p95, %p96
      %p98 = scmp.ne.s32.totalorder %s89, %s90
      %p99 = scmp.eq.s32.totalorder %s23, 0
      %p100 = por %p98, %p99
      %p101 = scmp.ne.s32.totalorder %s89, %s90
      %p102 = scmp.eq.s32.totalorder %s24, 5
      %p103 = por %p101, %p102
      %p105 = scmp.ne.s32.totalorder %s90, %s104
      %p106 = scmp.eq.s32.totalorder %s24, 0
      %p107 = por %p105, %p106
      %s109 = sadd.s32 %s108, 1
      %p112 = scmp.eq.s32.totalorder %s18, 5
      %p113 = scmp.ne.s32.totalorder %s108, %s110
      %p114 = scmp.eq.s32.totalorder %s18, 0
      %p115 = por %p113, %p114
      %p116 = scmp.ne.s32.totalorder %s108, %s110
      %p117 = scmp.eq.s32.totalorder %s23, 5
      %p118 = por %p116, %p117
      %p119 = scmp.ne.s32.totalorder %s110, %s111
      %p120 = scmp.eq.s32.totalorder %s23, 0
      %p121 = por %p119, %p120
      %p122 = scmp.ne.s32.totalorder %s110, %s111
      %p123 = scmp.eq.s32.totalorder %s24, 5
      %p124 = por %p122, %p123
      %p126 = scmp.ne.s32.totalorder %s111, %s125
      %p127 = scmp.eq.s32.totalorder %s24, 0
      %p128 = por %p126, %p127
      %s130 = sadd.s32 %s129, 1
      %p133 = scmp.eq.s32.totalorder %s18, 5
      %p134 = scmp.ne.s32.totalorder %s129, %s131
      %p135 = scmp.eq.s32.totalorder %s18, 0
      %p136 = por %p134, %p135
      %p137 = scmp.ne.s32.totalorder %s129, %s131
      %p138 = scmp.eq.s32.totalorder %s23, 5
      %p139 = por %p137, %p138
      %p140 = scmp.ne.s32.totalorder %s131, %s132
      %p141 = scmp.eq.s32.totalorder %s23, 0
      %p142 = por %p140, %p141
      %p143 = scmp.ne.s32.totalorder %s131, %s132
      %p144 = scmp.eq.s32.totalorder %s24, 5
      %p145 = por %p143, %p144
      %p147 = scmp.ne.s32.totalorder %s132, %s146
      %p148 = scmp.eq.s32.totalorder %s24, 0
      %p149 = por %p147, %p148
      %s150 = ssub.s32 %s25, %s37
      %p151 = scmp.eq.s32.totalorder %s150, 0
      %s153 = sadd.s32 %s152, 1
      %s154 = scalar_select %p151, %s152, %s153
      %p157 = pneg %p151
      %p158 = scmp.eq.s32.totalorder %s18, 5
      %p159 = por %p157, %p158
      %p160 = scmp.ne.s32.totalorder %s152, %s155
      %p161 = scmp.eq.s32.totalorder %s18, 0
      %p162 = por %p160, %p161
      %p163 = scmp.ne.s32.totalorder %s152, %s155
      %p164 = scmp.eq.s32.totalorder %s23, 5
      %p165 = por %p163, %p164
      %p166 = scmp.ne.s32.totalorder %s155, %s156
      %p167 = scmp.eq.s32.totalorder %s23, 0
      %p168 = por %p166, %p167
      %p169 = scmp.ne.s32.totalorder %s155, %s156
      %p170 = scmp.eq.s32.totalorder %s24, 5
      %p171 = por %p169, %p170
      %p173 = scmp.ne.s32.totalorder %s156, %s172
      %p174 = scmp.eq.s32.totalorder %s24, 0
      %p175 = por %p173, %p174
      %p176 = scmp.le.s32.totalorder 1, %s18
      %p177 = scmp.lt.s32.totalorder %s18, 7
      %p178 = pnand %p176, %p177
      %p179 = pneg %p178
      // Predicated region
      $region9: #{tpu_custom_call.1} parent=5 // pred_check
        _
      $region10: #{tpu_custom_call.1} parent=5 // pred_check_branch
        %181 = sbr.rel (%p178) target = $region12
      $region11: #{tpu_custom_call.1} parent=5 // pred_region
        %s182 = ssub.s32 %s18, 1
        // Predicated region
        $region13: #{tpu_custom_call.1} parent=11 // pred_check
          %p183 = pneg %p79
        $region14: #{tpu_custom_call.1} parent=11 // pred_check_branch
          %185 = sbr.rel (%p183) target = $region16
        $region15: #{tpu_custom_call.1} parent=11 // pred_region
          %s187 = ssub.s32 1024, 1024
          %188 = vsyncadd [#allocation7], %s187
          %s189 = sshll.u32 [#allocation6], 4
          %s190 = int_to_ptr.vmem [resolvable:$true] %s189
          %195 = dma.hbm_to_vmem [thread:$0]  %s1, 1024, %s190, [#allocation7], 64, 64, 4
        $region16: #{tpu_custom_call.1} parent=11 // pred_fallthru
          _
        // Predicated region
        $region17: #{tpu_custom_call.1} parent=11 // pred_check
          %p196 = pneg %p100
        $region18: #{tpu_custom_call.1} parent=11 // pred_check_branch
          %198 = sbr.rel (%p196) target = $region20
        $region19: #{tpu_custom_call.1} parent=11 // pred_region
          _
        $region20: #{tpu_custom_call.1} parent=11 // pred_fallthru
          _
        // Predicated region
        $region21: #{tpu_custom_call.1} parent=11 // pred_check
          %p199 = pneg %p121
        $region22: #{tpu_custom_call.1} parent=11 // pred_check_branch
          %201 = sbr.rel (%p199) target = $region24
        $region23: #{tpu_custom_call.1} parent=11 // pred_region
          %s203 = ssub.s32 2048, 2048
          %204 = vsyncadd [#allocation7], %s203
          %s205 = sshll.u32 [#allocation8], 4
          %s206 = int_to_ptr.vmem [resolvable:$true] %s205
          %211 = dma.hbm_to_vmem [thread:$0]  %s3, 2048, %s206, [#allocation7], 128, 128, 8
        $region24: #{tpu_custom_call.1} parent=11 // pred_fallthru
          _
        // Predicated region
        $region25: #{tpu_custom_call.1} parent=11 // pred_check
          %p212 = pneg %p142
        $region26: #{tpu_custom_call.1} parent=11 // pred_check_branch
          %214 = sbr.rel (%p212) target = $region28
        $region27: #{tpu_custom_call.1} parent=11 // pred_region
          _
        $region28: #{tpu_custom_call.1} parent=11 // pred_fallthru
          _
      $region12: #{tpu_custom_call.1} parent=5 // pred_fallthru
        _
      %p215 = scmp.lt.s32.totalorder %s18, 6
      // Predicated region
      $region29: #{tpu_custom_call.1} parent=5 // pred_check
        %p216 = pneg %p215
      $region30: #{tpu_custom_call.1} parent=5 // pred_check_branch
        %218 = sbr.rel (%p216) target = $region32
      $region31: #{tpu_custom_call.1} parent=5 // pred_region
        // Predicated region
        $region33: #{tpu_custom_call.1} parent=31 // pred_check
          %p219 = pneg %p52
        $region34: #{tpu_custom_call.1} parent=31 // pred_check_branch
          %221 = sbr.rel (%p219) target = $region36
        $region35: #{tpu_custom_call.1} parent=31 // pred_region
          %s222 = sand.u32 %s42, 1
          %s223 = scalar_lea.sflag [#allocation4], %s222
          %s224 = sand.u32 %s42, 1
          %s225 = smul.addr %s224, 48
          %s226 = scalar_lea.vmem [#allocation3], %s225
          %s227 = smul.u32 12, %s26
          %s229 = ssub.s32 768, 768
          %230 = vsyncadd %s223, %s229
          %s231 = smul.addr %s25, 36
          %s232 = sadd.s32 %s227, %s231
          %s233 = smul.addr %s232, 64
          %s234 = scalar_lea.hbm %s0, %s233
          %s235 = sshll.u32 %s226, 4
          %s236 = int_to_ptr.vmem [resolvable:$true] %s235
          %241 = dma.hbm_to_vmem [thread:$0]  %s234, 768, %s236, %s223, 64, 64, 4
        $region36: #{tpu_custom_call.1} parent=31 // pred_fallthru
          _
      $region32: #{tpu_custom_call.1} parent=5 // pred_fallthru
        _
      %p242 = scmp.le.s32.totalorder 1, %s18
      %p243 = scmp.lt.s32.totalorder %s18, 7
      %p244 = pnand %p242, %p243
      %p245 = pneg %p244
      // Predicated region
      $region37: #{tpu_custom_call.1} parent=5 // pred_check
        _
      $region38: #{tpu_custom_call.1} parent=5 // pred_check_branch
        %247 = sbr.rel (%p244) target = $region40
      $region39: #{tpu_custom_call.1} parent=5 // pred_region
        %s248 = ssub.s32 %s18, 1
        %s249 = sand.u32 %s45, 1
        %s250 = scalar_lea.sflag [#allocation4], %s249
        %s251 = sand.u32 %s45, 1
        %s252 = smul.addr %s251, 48
        %s253 = scalar_lea.vmem [#allocation3], %s252
        // Predicated region
        $region41: #{tpu_custom_call.1} parent=39 // pred_check
          %p254 = pneg %p58
        $region42: #{tpu_custom_call.1} parent=39 // pred_check_branch
          %256 = sbr.rel (%p254) target = $region44
        $region43: #{tpu_custom_call.1} parent=39 // pred_region
          %257 = dma.done %s250, 768
        $region44: #{tpu_custom_call.1} parent=39 // pred_fallthru
          _
        // Predicated region
        $region45: #{tpu_custom_call.1} parent=39 // pred_check
          %p258 = pneg %p79
        $region46: #{tpu_custom_call.1} parent=39 // pred_check_branch
          %260 = sbr.rel (%p258) target = $region48
        $region47: #{tpu_custom_call.1} parent=39 // pred_region
          %261 = dma.done [#allocation7], 1024
        $region48: #{tpu_custom_call.1} parent=39 // pred_fallthru
          _
        // Predicated region
        $region49: #{tpu_custom_call.1} parent=39 // pred_check
          %p262 = pneg %p121
        $region50: #{tpu_custom_call.1} parent=39 // pred_check_branch
          %264 = sbr.rel (%p262) target = $region52
        $region51: #{tpu_custom_call.1} parent=39 // pred_region
          %265 = dma.done [#allocation7], 2048
        $region52: #{tpu_custom_call.1} parent=39 // pred_fallthru
          _
        %s266 = sand.u32 %s45, 1
        %s267 = scalar_lea.sflag [#allocation4], %s266
        %s268 = sand.u32 %s45, 1
        %s269 = smul.addr %s268, 48
        %s270 = scalar_lea.vmem [#allocation3], %s269
        %p271 = pneg %p58
        %p272 = pneg %p55
        %p273 = pneg %p79
        %p274 = pneg %p76
        %p275 = pneg %p100
        %p276 = pneg %p97
        %p277 = pneg %p121
        %p278 = pneg %p118
        %p279 = pneg %p142
        %p280 = pneg %p139
        %p281 = pneg %p168
        %p282 = pneg %p165
        %s283 = sand.u32 %s155, 1
        %s284 = scalar_lea.sflag [#allocation5], %s283
        %s285 = sand.u32 %s155, 1
        %s286 = scalar_lea.vmem [#allocation9], %s285
        %s287 = smul.u32 12, %s28
        %p289 = scmp.eq.s32.totalorder %s28, 0
        // Predicated region
        $region53: #{tpu_custom_call.1} parent=39 // pred_check
          %p290 = pneg %p289
        $region54: #{tpu_custom_call.1} parent=39 // pred_check_branch
          %292 = sbr.rel (%p290) target = $region56
        $region55: #{tpu_custom_call.1} parent=39 // pred_region
          %293 = vst [vmem:[#allocation2] sm:$0x1] 0.0
        $region56: #{tpu_custom_call.1} parent=39 // pred_fallthru
          _
        %v294 = vld [vmem:[%s253] sm:$0xf]
        %v295 = vld [vmem:[%s253 + $0x4] sm:$0xf]
        %v296 = vld [vmem:[%s253 + $0x8] sm:$0xf]
        %v297 = vld [vmem:[%s253 + $0xc] sm:$0xf]
        %v298 = vld [vmem:[%s253 + $0x10] sm:$0xf]
        %v299 = vld [vmem:[%s253 + $0x14] sm:$0xf]
        %v300 = vld [vmem:[%s253 + $0x18] sm:$0xf]
        %v301 = vld [vmem:[%s253 + $0x1c] sm:$0xf]
        %v302 = vld [vmem:[%s253 + $0x20] sm:$0xf]
        %v303 = vld [vmem:[%s253 + $0x24] sm:$0xf]
        %v304 = vld [vmem:[%s253 + $0x28] sm:$0xf]
        %v305 = vld [vmem:[%s253 + $0x2c] sm:$0xf]
        %v306 = vld [vmem:[#allocation6] sm:$0xf]
        %v307 = vld [vmem:[#allocation6 + $0x4] sm:$0xf]
        %v308 = vld [vmem:[#allocation6 + $0x8] sm:$0xf]
        %v309 = vld [vmem:[#allocation6 + $0xc] sm:$0xf]
        %v310 = vld [vmem:[#allocation6 + $0x10] sm:$0xf]
        %v311 = vld [vmem:[#allocation6 + $0x14] sm:$0xf]
        %v312 = vld [vmem:[#allocation6 + $0x18] sm:$0xf]
        %v313 = vld [vmem:[#allocation6 + $0x1c] sm:$0xf]
        %v314 = vld [vmem:[#allocation6 + $0x20] sm:$0xf]
        %v315 = vld [vmem:[#allocation6 + $0x24] sm:$0xf]
        %v316 = vld [vmem:[#allocation6 + $0x28] sm:$0xf]
        %v317 = vld [vmem:[#allocation6 + $0x2c] sm:$0xf]
        %v318 = vld [vmem:[#allocation6 + $0x30] sm:$0xf]
        %v319 = vld [vmem:[#allocation6 + $0x34] sm:$0xf]
        %v320 = vld [vmem:[#allocation6 + $0x38] sm:$0xf]
        %v321 = vld [vmem:[#allocation6 + $0x3c] sm:$0xf]
        %v322 = vld [vmem:[%s2] sm:$0x1]
        %v324 = vlaneseq
        %v325 = vshrl.u32 %v324, 7
        %v326 = vsub.s32 0, %v325
        %v327 = vrot.slane %v322, %v326
        %v341 = vunpack.c.l.b16 %v294
        %v342 = vunpack.c.l.b16 %v295
        %v343 = vunpack.c.l.b16 %v296
        %v344 = vunpack.c.l.b16 %v297
        %v345 = vunpack.c.l.b16 %v298
        %v346 = vunpack.c.l.b16 %v299
        %v347 = vunpack.c.l.b16 %v300
        %v348 = vunpack.c.l.b16 %v301
        %v349 = vunpack.c.l.b16 %v302
        %v350 = vunpack.c.l.b16 %v303
        %v351 = vunpack.c.l.b16 %v304
        %v352 = vunpack.c.l.b16 %v305
        %v353 = vpack.c.b16 %v342, %v341
        %v354 = vpack.c.b16 %v344, %v343
        %v355 = vpack.c.b16 %v346, %v345
        %v356 = vpack.c.b16 %v348, %v347
        %v357 = vpack.c.b16 %v350, %v349
        %v358 = vpack.c.b16 %v352, %v351
        %v381 = vunpack.c.l.b16 %v306
        %v382 = vunpack.c.l.b16 %v307
        %v383 = vunpack.c.l.b16 %v308
        %v384 = vunpack.c.l.b16 %v309
        %v385 = vunpack.c.l.b16 %v310
        %v386 = vunpack.c.l.b16 %v311
        %v387 = vunpack.c.l.b16 %v312
        %v388 = vunpack.c.l.b16 %v313
        %v389 = vunpack.c.l.b16 %v314
        %v390 = vunpack.c.l.b16 %v315
        %v391 = vunpack.c.l.b16 %v316
        %v392 = vunpack.c.l.b16 %v317
        %v393 = vunpack.c.l.b16 %v318
        %v394 = vunpack.c.l.b16 %v319
        %v395 = vunpack.c.l.b16 %v320
        %v396 = vunpack.c.l.b16 %v321
        %v397 = vpack.c.b16 %v382, %v381
        %v398 = vpack.c.b16 %v384, %v383
        %v399 = vpack.c.b16 %v386, %v385
        %v400 = vpack.c.b16 %v388, %v387
        %v401 = vpack.c.b16 %v390, %v389
        %v402 = vpack.c.b16 %v392, %v391
        %v403 = vpack.c.b16 %v394, %v393
        %v404 = vpack.c.b16 %v396, %v395
        %413 = vmatprep.subr.bf16.mxu0 0
        %414 = vmatpush1.bf16.msra.mxu0 %v397
        %415 = vmatprep.subr.bf16.mxu0 0
        %416 = vmatpush1.bf16.msra.mxu0 %v398
        %417 = vmatprep.subr.bf16.mxu0 0
        %418 = vmatpush1.bf16.msra.mxu0 %v399
        %419 = vmatprep.subr.bf16.mxu0 0
        %420 = vmatpush1.bf16.msra.mxu0 %v400
        %421 = vmatprep.subr.bf16.mxu0 0
        %422 = vmatpush1.bf16.msra.mxu0 %v401
        %423 = vmatprep.subr.bf16.mxu0 0
        %424 = vmatpush1.bf16.msra.mxu0 %v402
        %425 = vmatprep.subr.bf16.mxu0 0
        %426 = vmatpush1.bf16.msra.mxu0 %v403
        %427 = vmatprep.subr.bf16.mxu0 0
        %428 = vmatpush1.bf16.msra.mxu0 %v404
        %429 = vmatprep.subr.bf16.mxu0 0
        %430 = vmatpush1.bf16.msra.mxu0 0
        %431 = vmatprep.subr.bf16.mxu0 0
        %432 = vmatpush1.bf16.msra.mxu0 0
        %433 = vmatprep.subr.bf16.mxu0 0
        %434 = vmatpush1.bf16.msra.mxu0 0
        %435 = vmatprep.subr.bf16.mxu0 0
        %436 = vmatpush1.bf16.msra.mxu0 0
        %437 = vmatprep.subr.bf16.mxu0 0
        %438 = vmatpush1.bf16.msra.mxu0 0
        %439 = vmatprep.subr.bf16.mxu0 0
        %440 = vmatpush1.bf16.msra.mxu0 0
        %441 = vmatprep.subr.bf16.mxu0 0
        %442 = vmatpush1.bf16.msra.mxu0 0
        %443 = vmatprep.subr.bf16.mxu0 0
        %444 = vmatpush1.bf16.msra.mxu0 0
        %445 = vmatprep.mubr.bf16.mxu0 0
        %446 = vmatmul.mubr.bf16.gmra.mrb[0].mxu0 %v353
        %v447 = vpop.f32.mrb[0].mxu0
        %v448 = vadd.f32 %v327, %v447
        %v449 = vpop.f32.mrb[0].mxu0
        %v450 = vpop.f32.mrb[0].mxu0
        %v451 = vadd.f32 %v327, %v450
        %v452 = vpop.f32.mrb[0].mxu0
        %453 = vmatprep.mubr.bf16.mxu0 0
        %454 = vmatmul.mubr.bf16.gmra.mrb[0].mxu0 %v354
        %v455 = vpop.f32.mrb[0].mxu0
        %v456 = vadd.f32 %v327, %v455
        %v457 = vpop.f32.mrb[0].mxu0
        %v458 = vpop.f32.mrb[0].mxu0
        %v459 = vadd.f32 %v327, %v458
        %v460 = vpop.f32.mrb[0].mxu0
        %461 = vmatprep.mubr.bf16.mxu0 0
        %462 = vmatmul.mubr.bf16.gmra.mrb[0].mxu0 %v355
        %v463 = vpop.f32.mrb[0].mxu0
        %v464 = vadd.f32 %v327, %v463
        %v465 = vpop.f32.mrb[0].mxu0
        %v466 = vpop.f32.mrb[0].mxu0
        %v467 = vadd.f32 %v327, %v466
        %v468 = vpop.f32.mrb[0].mxu0
        %469 = vmatprep.mubr.bf16.mxu0 0
        %470 = vmatmul.mubr.bf16.gmra.mrb[0].mxu0 %v356
        %v471 = vpop.f32.mrb[0].mxu0
        %v472 = vadd.f32 %v327, %v471
        %v473 = vpop.f32.mrb[0].mxu0
        %v474 = vpop.f32.mrb[0].mxu0
        %v475 = vadd.f32 %v327, %v474
        %v476 = vpop.f32.mrb[0].mxu0
        %477 = vmatprep.mubr.bf16.mxu0 0
        %478 = vmatmul.mubr.bf16.gmra.mrb[0].mxu0 %v357
        %v479 = vpop.f32.mrb[0].mxu0
        %v480 = vadd.f32 %v327, %v479
        %v481 = vpop.f32.mrb[0].mxu0
        %v482 = vpop.f32.mrb[0].mxu0
        %v483 = vadd.f32 %v327, %v482
        %v484 = vpop.f32.mrb[0].mxu0
        %485 = vmatprep.mubr.bf16.mxu0 0
        %486 = vmatmul.mubr.bf16.gmra.mrb[0].mxu0 %v358
        %v487 = vpop.f32.mrb[0].mxu0
        %v488 = vadd.f32 %v327, %v487
        %v489 = vpop.f32.mrb[0].mxu0
        %v490 = vpop.f32.mrb[0].mxu0
        %v491 = vadd.f32 %v327, %v490
        %v492 = vpop.f32.mrb[0].mxu0
        %493 = vdwg.mxu0
        %v494 = vmax.f32 %v448, 0.0
        %v495 = vmax.f32 %v451, 0.0
        %v496 = vmax.f32 %v456, 0.0
        %v497 = vmax.f32 %v459, 0.0
        %v498 = vmax.f32 %v464, 0.0
        %v499 = vmax.f32 %v467, 0.0
        %v500 = vmax.f32 %v472, 0.0
        %v501 = vmax.f32 %v475, 0.0
        %v502 = vmax.f32 %v480, 0.0
        %v503 = vmax.f32 %v483, 0.0
        %v504 = vmax.f32 %v488, 0.0
        %v505 = vmax.f32 %v491, 0.0
        %s506 = smul.u32 %s28, 96
        %v507 = vlaneseq
        %v508 = vshrl.u32 %v507, 7
        %v509 = vadd.s32 %v508, 8
        %v510 = vadd.s32 %v508, 16
        %v511 = vadd.s32 %v508, 24
        %v512 = vadd.s32 %v508, 32
        %v513 = vadd.s32 %v508, 40
        %v514 = vadd.s32 %v508, 48
        %v515 = vadd.s32 %v508, 56
        %v516 = vadd.s32 %v508, 64
        %v517 = vadd.s32 %v508, 72
        %v518 = vadd.s32 %v508, 80
        %v519 = vadd.s32 %v508, 88
        %v520 = vstv %s506
        %v521 = vadd.s32 %v520, %v508
        %v522 = vadd.s32 %v520, %v509
        %v523 = vadd.s32 %v520, %v510
        %v524 = vadd.s32 %v520, %v511
        %v525 = vadd.s32 %v520, %v512
        %v526 = vadd.s32 %v520, %v513
        %v527 = vadd.s32 %v520, %v514
        %v528 = vadd.s32 %v520, %v515
        %v529 = vadd.s32 %v520, %v516
        %v530 = vadd.s32 %v520, %v517
        %v531 = vadd.s32 %v520, %v518
        %v532 = vadd.s32 %v520, %v519
        %vm533 = vcmp.lt.s32.totalorder %v521, 256
        %vm534 = vcmp.lt.s32.totalorder %v522, 256
        %vm535 = vcmp.lt.s32.totalorder %v523, 256
        %vm536 = vcmp.lt.s32.totalorder %v524, 256
        %vm537 = vcmp.lt.s32.totalorder %v525, 256
        %vm538 = vcmp.lt.s32.totalorder %v526, 256
        %vm539 = vcmp.lt.s32.totalorder %v527, 256
        %vm540 = vcmp.lt.s32.totalorder %v528, 256
        %vm541 = vcmp.lt.s32.totalorder %v529, 256
        %vm542 = vcmp.lt.s32.totalorder %v530, 256
        %vm543 = vcmp.lt.s32.totalorder %v531, 256
        %vm544 = vcmp.lt.s32.totalorder %v532, 256
        %v545 = vsel %vm533, %v494, 0.0
        %v546 = vsel %vm534, %v495, 0.0
        %v547 = vsel %vm535, %v496, 0.0
        %v548 = vsel %vm536, %v497, 0.0
        %v549 = vsel %vm537, %v498, 0.0
        %v550 = vsel %vm538, %v499, 0.0
        %v551 = vsel %vm539, %v500, 0.0
        %v552 = vsel %vm540, %v501, 0.0
        %v553 = vsel %vm541, %v502, 0.0
        %v554 = vsel %vm542, %v503, 0.0
        %v555 = vsel %vm543, %v504, 0.0
        %v556 = vsel %vm544, %v505, 0.0
        %v557 = vld [vmem:[#allocation2] sm:$0x1]
        %v558 = vadd.f32 %v545, %v546
        %v559 = vadd.f32 %v558, %v547
        %v560 = vadd.f32 %v559, %v548
        %v561 = vadd.f32 %v560, %v549
        %v562 = vadd.f32 %v561, %v550
        %v563 = vadd.f32 %v562, %v551
        %v564 = vadd.f32 %v563, %v552
        %v565 = vadd.f32 %v564, %v553
        %v566 = vadd.f32 %v565, %v554
        %v567 = vadd.f32 %v566, %v555
        %v568 = vadd.f32 %v567, %v556
        %v569 = vrot.slane %v568, 4
        %v570 = vadd.f32 %v568, %v569
        %v571 = vrot.slane %v570, 2
        %v572 = vadd.f32 %v570, %v571
        %v573 = vrot.slane %v572, 1
        %v574 = vadd.f32 %v572, %v573
        %v575 = vadd.f32 %v557, %v574
        %576 = vst [vmem:[#allocation2] sm:$0x1] %v575
        %p577 = scmp.eq.s32.totalorder %s28, 2
        // Predicated region
        $region57: #{tpu_custom_call.1} parent=39 // pred_check
          %p578 = pneg %p577
        $region58: #{tpu_custom_call.1} parent=39 // pred_check_branch
          %580 = sbr.rel (%p578) target = $region60
        $region59: #{tpu_custom_call.1} parent=39 // pred_region
          %v581 = vld [vmem:[#allocation2] sm:$0x1]
          %v582 = vmul.f32 %v581, 0.00390625
          %v583 = vld [vmem:[#allocation8] sm:$0xff]
          %v584 = vld [vmem:[#allocation8 + $0x8] sm:$0xff]
          %v585 = vld [vmem:[#allocation8 + $0x10] sm:$0xff]
          %v586 = vld [vmem:[#allocation8 + $0x18] sm:$0xff]
          %v587 = vld [vmem:[#allocation8 + $0x20] sm:$0xff]
          %v588 = vld [vmem:[#allocation8 + $0x28] sm:$0xff]
          %v589 = vld [vmem:[#allocation8 + $0x30] sm:$0xff]
          %v590 = vld [vmem:[#allocation8 + $0x38] sm:$0xff]
          %v591 = vld [vmem:[#allocation8 + $0x40] sm:$0xff]
          %v592 = vld [vmem:[#allocation8 + $0x48] sm:$0xff]
          %v593 = vld [vmem:[#allocation8 + $0x50] sm:$0xff]
          %v594 = vld [vmem:[#allocation8 + $0x58] sm:$0xff]
          %v595 = vld [vmem:[#allocation8 + $0x60] sm:$0xff]
          %v596 = vld [vmem:[#allocation8 + $0x68] sm:$0xff]
          %v597 = vld [vmem:[#allocation8 + $0x70] sm:$0xff]
          %v598 = vld [vmem:[#allocation8 + $0x78] sm:$0xff]
          %v599 = vld [vmem:[%s4] sm:$0x1]
          %600 = vmatprep.subr.mxu0 0.0
          %601 = vmatpush1.msra.mxu0 %v583
          %602 = vmatprep.subr.mxu0 0.0
          %603 = vmatpush1.msra.mxu0 %v584
          %604 = vmatprep.subr.mxu0 0.0
          %605 = vmatpush1.msra.mxu0 %v585
          %606 = vmatprep.subr.mxu0 0.0
          %607 = vmatpush1.msra.mxu0 %v586
          %608 = vmatprep.subr.mxu0 0.0
          %609 = vmatpush1.msra.mxu0 %v587
          %610 = vmatprep.subr.mxu0 0.0
          %611 = vmatpush1.msra.mxu0 %v588
          %612 = vmatprep.subr.mxu0 0.0
          %613 = vmatpush1.msra.mxu0 %v589
          %614 = vmatprep.subr.mxu0 0.0
          %615 = vmatpush1.msra.mxu0 %v590
          %616 = vmatprep.subr.mxu0 0.0
          %617 = vmatpush1.msra.mxu0 %v591
          %618 = vmatprep.subr.mxu0 0.0
          %619 = vmatpush1.msra.mxu0 %v592
          %620 = vmatprep.subr.mxu0 0.0
          %621 = vmatpush1.msra.mxu0 %v593
          %622 = vmatprep.subr.mxu0 0.0
          %623 = vmatpush1.msra.mxu0 %v594
          %624 = vmatprep.subr.mxu0 0.0
          %625 = vmatpush1.msra.mxu0 %v595
          %626 = vmatprep.subr.mxu0 0.0
          %627 = vmatpush1.msra.mxu0 %v596
          %628 = vmatprep.subr.mxu0 0.0
          %629 = vmatpush1.msra.mxu0 %v597
          %630 = vmatprep.subr.mxu0 0.0
          %631 = vmatpush1.msra.mxu0 %v598
          %632 = vmatprep.subr.mxu0 0.0
          %633 = vmatpush1.msra.mxu0 0.0
          %634 = vmatprep.subr.mxu0 0.0
          %635 = vmatpush1.msra.mxu0 0.0
          %636 = vmatprep.subr.mxu0 0.0
          %637 = vmatpush1.msra.mxu0 0.0
          %638 = vmatprep.subr.mxu0 0.0
          %639 = vmatpush1.msra.mxu0 0.0
          %640 = vmatprep.subr.mxu0 0.0
          %641 = vmatpush1.msra.mxu0 0.0
          %642 = vmatprep.subr.mxu0 0.0
          %643 = vmatpush1.msra.mxu0 0.0
          %644 = vmatprep.subr.mxu0 0.0
          %645 = vmatpush1.msra.mxu0 0.0
          %646 = vmatprep.subr.mxu0 0.0
          %647 = vmatpush1.msra.mxu0 0.0
          %648 = vmatprep.subr.mxu0 0.0
          %649 = vmatpush1.msra.mxu0 0.0
          %650 = vmatprep.subr.mxu0 0.0
          %651 = vmatpush1.msra.mxu0 0.0
          %652 = vmatprep.subr.mxu0 0.0
          %653 = vmatpush1.msra.mxu0 0.0
          %654 = vmatprep.subr.mxu0 0.0
          %655 = vmatpush1.msra.mxu0 0.0
          %656 = vmatprep.subr.mxu0 0.0
          %657 = vmatpush1.msra.mxu0 0.0
          %658 = vmatprep.subr.mxu0 0.0
          %659 = vmatpush1.msra.mxu0 0.0
          %660 = vmatprep.subr.mxu0 0.0
          %661 = vmatpush1.msra.mxu0 0.0
          %662 = vmatprep.subr.mxu0 0.0
          %663 = vmatpush1.msra.mxu0 0.0
          %664 = vmatprep.mubr.f32.mxu0 0.0
          %665 = vmatmul.mubr.f32.gmra.mrb[0].mxu0 %v582
          %v666 = vpop.f32.mrb[0].mxu0
          %v667 = vadd.f32 %v599, %v666
          %v668 = vpop.f32.mrb[0].mxu0
          %669 = vdwg.mxu0
          %670 = vst [vmem:[%s286] sm:$0x1] %v667
        $region60: #{tpu_custom_call.1} parent=39 // pred_fallthru
          _
        %s671 = sand.u32 %s155, 1
        %s672 = scalar_lea.sflag [#allocation5], %s671
        %s673 = sand.u32 %s155, 1
        %s674 = scalar_lea.vmem [#allocation9], %s673
        // Predicated region
        $region61: #{tpu_custom_call.1} parent=39 // pred_check
          %p675 = pneg %p165
        $region62: #{tpu_custom_call.1} parent=39 // pred_check_branch
          %677 = sbr.rel (%p675) target = $region64
        $region63: #{tpu_custom_call.1} parent=39 // pred_region
          %s679 = ssub.s32 16, 16
          %680 = vsyncadd %s672, %s679
          %s681 = smul.addr %s27, 16
          %s682 = scalar_lea.hbm %s5, %s681
          %s684 = sshll.u32 %s674, 4
          %s685 = int_to_ptr.vmem [resolvable:$true] %s684
          %687 = dma.vmem_to_hbm [thread:$0]  %s685, 16, %s682, %s672
        $region64: #{tpu_custom_call.1} parent=39 // pred_fallthru
          _
      $region40: #{tpu_custom_call.1} parent=5 // pred_fallthru
        _
      %p688 = scmp.le.s32.totalorder 2, %s18
      // Predicated region
      $region65: #{tpu_custom_call.1} parent=5 // pred_check
        %p689 = pneg %p688
      $region66: #{tpu_custom_call.1} parent=5 // pred_check_branch
        %691 = sbr.rel (%p689) target = $region68
      $region67: #{tpu_custom_call.1} parent=5 // pred_region
        %s692 = ssub.s32 %s18, 2
        // Predicated region
        $region69: #{tpu_custom_call.1} parent=67 // pred_check
          %p693 = pneg %p171
        $region70: #{tpu_custom_call.1} parent=67 // pred_check_branch
          %695 = sbr.rel (%p693) target = $region72
        $region71: #{tpu_custom_call.1} parent=67 // pred_region
          %s696 = sand.u32 %s156, 1
          %s697 = scalar_lea.sflag [#allocation5], %s696
          %s698 = sand.u32 %s156, 1
          %s699 = scalar_lea.vmem [#allocation9], %s698
          %700 = dma.done %s697, 16
        $region72: #{tpu_custom_call.1} parent=67 // pred_fallthru
          _
      $region68: #{tpu_custom_call.1} parent=5 // pred_fallthru
        _
    $region6: #{tpu_custom_call.1} parent=1 // loop_footer
      %s22 = sadd.s32 1, %s18
    $region7: #{tpu_custom_call.1} parent=1 // loop_footer_branch
      %17 = sbr.rel target = $region3
    $region8: #{tpu_custom_call.1} parent=1 // loop_exit
      _
    %701 = vsyncpa [#allocation4], 1
    %s702 = scalar_lea.sflag [#allocation4], 1
    %703 = vsyncpa %s702, 1
    %704 = vsyncpa [#allocation7], 1
    %705 = vsyncpa [#allocation5], 1
    %s706 = scalar_lea.sflag [#allocation5], 1
    %707 = vsyncpa %s706, 1

</llo_original>
